<compile_context>
chip_gen: v6e
topology: v6e:2x2x1
jax: 0.10.0
libtpu: 0.0.40
codegen_flags: <defaults>
</compile_context>

<pallas_src>
import jax
import jax.numpy as jnp
from jax.experimental import pallas as pl
from jax.experimental.pallas import tpu as pltpu

_LANE = 128
_SUBLANE = 8


def _round_up(x, m):
    return (x + m - 1) // m * m


def _dqn_mlp_kernel(x_ref, w1_ref, b1_ref, w2_ref, b2_ref, w3_ref, b3_ref, o_ref):
    # Layer 1: Linear + ReLU. Cast operands to bf16 right before the dot
    # (MXU runs bf16 natively), accumulate in f32; bias + ReLU in f32.
    x = x_ref[...].astype(jnp.bfloat16)
    h1 = jnp.dot(x, w1_ref[...], preferred_element_type=jnp.float32)
    h1 = jnp.maximum(h1 + b1_ref[...], 0.0)

    # Layer 2: Linear + ReLU
    h2 = jnp.dot(h1.astype(jnp.bfloat16), w2_ref[...],
                 preferred_element_type=jnp.float32)
    h2 = jnp.maximum(h2 + b2_ref[...], 0.0)

    # Layer 3: Linear (Q-values, no activation). Output is lane-padded to 128
    # and stored as bf16 to halve the writeback stream.
    q = jnp.dot(h2.astype(jnp.bfloat16), w3_ref[...],
                preferred_element_type=jnp.float32)
    o_ref[...] = (q + b3_ref[...]).astype(o_ref.dtype)


def dqn_forward(x, params, tile_b=2048, core_parallel=False, vmem_limit_bytes=None):
    """Full DQN MLP forward pass in a single Pallas kernel.

    x: (batch, input_size) float32 (or bfloat16 from an upstream producer)
    params: dict with w1 (in,hid), b1 (1,hid), w2 (hid,hid), b2 (1,hid),
            w3 (hid,out), b3 (1,out) — float32 (weights cast to bf16 here).
    core_parallel: on v7x training batches (grid >= 2), shard the batch axis
            across both TensorCores.
    """
    w1 = params["w1"].astype(jnp.bfloat16)
    w2 = params["w2"].astype(jnp.bfloat16)
    w3 = params["w3"].astype(jnp.bfloat16)
    b1, b2, b3 = params["b1"], params["b2"], params["b3"]

    batch, in_size = x.shape
    hid = w1.shape[1]
    out_size = w3.shape[1]

    # Lane-pad the output (and w3/b3) so the store is an unmasked full-vreg write.
    out_pad = _round_up(out_size, _LANE)
    if out_pad != out_size:
        w3 = jnp.pad(w3, ((0, 0), (0, out_pad - out_size)))
        b3 = jnp.pad(b3, ((0, 0), (0, out_pad - out_size)))

    # Batch tiling: multiple of the f32 sublane (8), capped at tile_b.
    # Default tile_b=2048 -> grid=(1,) for any batch <= 2048 (the kernel is
    # per-grid-step-overhead bound; minimize steps).
    tile_b = min(tile_b, _round_up(batch, _SUBLANE))
    tile_b = _round_up(tile_b, _SUBLANE)
    batch_pad = _round_up(batch, tile_b)
    if batch_pad != batch:
        x = jnp.pad(x, ((0, batch_pad - batch), (0, 0)))

    grid = (batch_pad // tile_b,)

    # Weights/biases: constant block index -> DMA'd once; single-buffered
    # (never revisited), resident in VMEM across all batch tiles.
    def resident(a):
        return pl.BlockSpec(a.shape, lambda i: (0,) * a.ndim,
                            pipeline_mode=pl.Buffered(1))

    if core_parallel and grid[0] >= 2:
        dim_sem = (pltpu.CORE_PARALLEL,)   # use both v7x TensorCores
    else:
        dim_sem = ("arbitrary",)           # parallel vs arbitrary: measured no-op

    flops = 2 * batch_pad * (in_size * hid + hid * hid + hid * out_pad)
    bytes_accessed = (
        x.size * x.dtype.itemsize
        + sum(a.size * a.dtype.itemsize for a in (w1, b1, w2, b2, w3, b3))
        + batch_pad * out_pad * 2          # bf16 output writeback
    )

    out = pl.pallas_call(
        _dqn_mlp_kernel,
        out_shape=jax.ShapeDtypeStruct((batch_pad, out_pad), jnp.bfloat16),
        grid=grid,
        in_specs=[
            pl.BlockSpec((tile_b, in_size), lambda i: (i, 0)),  # x: tiled over batch
            resident(w1), resident(b1),
            resident(w2), resident(b2),
            resident(w3), resident(b3),
        ],
        out_specs=pl.BlockSpec((tile_b, out_pad), lambda i: (i, 0)),
        compiler_params=pltpu.CompilerParams(
            dimension_semantics=dim_sem,
            vmem_limit_bytes=vmem_limit_bytes,
        ),
        cost_estimate=pl.CostEstimate(
            flops=flops, transcendentals=0, bytes_accessed=bytes_accessed),
    )(x, w1, b1, w2, b2, w3, b3)

    return out[:batch, :out_size].astype(jnp.float32)


def init_params(key, input_size, output_size, hidden_size=128):
    """Deterministic init mirroring nn.Linear's default (uniform +/- 1/sqrt(fan_in))."""
    ks = jax.random.split(key, 6)

    def linear(kw, kb, fan_in, fan_out):
        bound = 1.0 / jnp.sqrt(fan_in)
        w = jax.random.uniform(kw, (fan_in, fan_out), jnp.float32, -bound, bound)
        b = jax.random.uniform(kb, (1, fan_out), jnp.float32, -bound, bound)
        return w, b

    w1, b1 = linear(ks[0], ks[1], input_size, hidden_size)
    w2, b2 = linear(ks[2], ks[3], hidden_size, hidden_size)
    w3, b3 = linear(ks[4], ks[5], hidden_size, output_size)
    return {"w1": w1, "b1": b1, "w2": w2, "b2": b2, "w3": w3, "b3": b3}


def _reference_forward(x, p):
    # Same bf16-operand / f32-accumulate recipe as the kernel (deviates from a
    # pure-f32 PyTorch forward by ~1e-2 relative; flagged in module docstring).
    w1 = p["w1"].astype(jnp.bfloat16)
    w2 = p["w2"].astype(jnp.bfloat16)
    w3 = p["w3"].astype(jnp.bfloat16)
    h1 = jnp.maximum(
        jnp.dot(x.astype(jnp.bfloat16), w1, preferred_element_type=jnp.float32)
        + p["b1"], 0.0)
    h2 = jnp.maximum(
        jnp.dot(h1.astype(jnp.bfloat16), w2, preferred_element_type=jnp.float32)
        + p["b2"], 0.0)
    return jnp.dot(h2.astype(jnp.bfloat16), w3,
                   preferred_element_type=jnp.float32) + p["b3"]


if __name__ == "__main__":
    key = jax.random.PRNGKey(0)
    k_param, k_x = jax.random.split(key)

    batch, input_size, hidden_size, output_size = 256, 32, 128, 8
    params = init_params(k_param, input_size, output_size, hidden_size)
    x = jax.random.normal(k_x, (batch, input_size), jnp.float32)

    # Default tile_b (2048) clamps to 256 -> grid=(1,): one step, no pipeline overhead.
    out = dqn_forward(x, params)
    out = jax.block_until_ready(out)

    ref = _reference_forward(x, params)
    assert out.shape == (batch, output_size)
    assert out.dtype == jnp.float32
    # Extra tolerance slack covers the bf16 output store.
    assert jnp.allclose(out, ref, atol=2e-2, rtol=2e-2), "mismatch vs reference"

    print("KERNEL_OK")
</pallas_src>

<mosaic_0001>
module attributes {stable_mosaic.version = 11 : i64} {
  func.func @_dqn_mlp_kernel(%arg0: i32, %arg1: memref<256x32xf32, #tpu.memory_space<vmem>>, %arg2: memref<32x128xbf16, #tpu.memory_space<vmem>>, %arg3: memref<1x128xf32, #tpu.memory_space<vmem>>, %arg4: memref<128x128xbf16, #tpu.memory_space<vmem>>, %arg5: memref<1x128xf32, #tpu.memory_space<vmem>>, %arg6: memref<128x128xbf16, #tpu.memory_space<vmem>>, %arg7: memref<1x128xf32, #tpu.memory_space<vmem>>, %arg8: memref<256x128xbf16, #tpu.memory_space<vmem>>) attributes {dimension_semantics = [#tpu.dimension_semantics<arbitrary>], iteration_bounds = array<i64: 1>, scalar_prefetch = 0 : i64, scratch_operands = 0 : i64, tpu.core_type = #tpu.core_type<tc>, window_params = [{transform_indices = @transform_0, window_bounds = array<i64: 256, 32>}, {pipeline_mode = #tpu.pipeline_mode<synchronous>, transform_indices = @transform_1, window_bounds = array<i64: 32, 128>}, {pipeline_mode = #tpu.pipeline_mode<synchronous>, transform_indices = @transform_2, window_bounds = array<i64: 1, 128>}, {pipeline_mode = #tpu.pipeline_mode<synchronous>, transform_indices = @transform_3, window_bounds = array<i64: 128, 128>}, {pipeline_mode = #tpu.pipeline_mode<synchronous>, transform_indices = @transform_4, window_bounds = array<i64: 1, 128>}, {pipeline_mode = #tpu.pipeline_mode<synchronous>, transform_indices = @transform_5, window_bounds = array<i64: 128, 128>}, {pipeline_mode = #tpu.pipeline_mode<synchronous>, transform_indices = @transform_6, window_bounds = array<i64: 1, 128>}, {transform_indices = @transform_7, window_bounds = array<i64: 256, 128>}]} {
    %c0 = arith.constant 0 : index
    %c0_0 = arith.constant 0 : index
    %0 = vector.load %arg1[%c0, %c0_0] : memref<256x32xf32, #tpu.memory_space<vmem>>, vector<256x32xf32>
    %1 = arith.truncf %0 : vector<256x32xf32> to vector<256x32xbf16>
    %c0_1 = arith.constant 0 : index
    %c0_2 = arith.constant 0 : index
    %2 = vector.load %arg2[%c0_1, %c0_2] : memref<32x128xbf16, #tpu.memory_space<vmem>>, vector<32x128xbf16>
    %cst = arith.constant dense<0.000000e+00> : vector<256x128xf32>
    %3 = tpu.matmul %1, %2, %cst {dimension_numbers = #tpu.dot_dimension_numbers<[1], [0], [0], [1], [0, 0, 1, 1], [], []>} : vector<256x32xbf16>, vector<32x128xbf16>, vector<256x128xf32> -> vector<256x128xf32>
    %c0_3 = arith.constant 0 : index
    %c0_4 = arith.constant 0 : index
    %4 = vector.load %arg3[%c0_3, %c0_4] : memref<1x128xf32, #tpu.memory_space<vmem>>, vector<1x128xf32>
    %5 = vector.broadcast %4 : vector<1x128xf32> to vector<256x128xf32>
    %6 = arith.addf %3, %5 : vector<256x128xf32>
    %cst_5 = arith.constant 0.000000e+00 : f32
    %7 = vector.broadcast %cst_5 : f32 to vector<256x128xf32>
    %8 = arith.maximumf %6, %7 : vector<256x128xf32>
    %9 = arith.truncf %8 : vector<256x128xf32> to vector<256x128xbf16>
    %c0_6 = arith.constant 0 : index
    %c0_7 = arith.constant 0 : index
    %10 = vector.load %arg4[%c0_6, %c0_7] : memref<128x128xbf16, #tpu.memory_space<vmem>>, vector<128x128xbf16>
    %cst_8 = arith.constant dense<0.000000e+00> : vector<256x128xf32>
    %11 = tpu.matmul %9, %10, %cst_8 {dimension_numbers = #tpu.dot_dimension_numbers<[1], [0], [0], [1], [0, 0, 1, 1], [], []>} : vector<256x128xbf16>, vector<128x128xbf16>, vector<256x128xf32> -> vector<256x128xf32>
    %c0_9 = arith.constant 0 : index
    %c0_10 = arith.constant 0 : index
    %12 = vector.load %arg5[%c0_9, %c0_10] : memref<1x128xf32, #tpu.memory_space<vmem>>, vector<1x128xf32>
    %13 = vector.broadcast %12 : vector<1x128xf32> to vector<256x128xf32>
    %14 = arith.addf %11, %13 : vector<256x128xf32>
    %cst_11 = arith.constant 0.000000e+00 : f32
    %15 = vector.broadcast %cst_11 : f32 to vector<256x128xf32>
    %16 = arith.maximumf %14, %15 : vector<256x128xf32>
    %17 = arith.truncf %16 : vector<256x128xf32> to vector<256x128xbf16>
    %c0_12 = arith.constant 0 : index
    %c0_13 = arith.constant 0 : index
    %18 = vector.load %arg6[%c0_12, %c0_13] : memref<128x128xbf16, #tpu.memory_space<vmem>>, vector<128x128xbf16>
    %cst_14 = arith.constant dense<0.000000e+00> : vector<256x128xf32>
    %19 = tpu.matmul %17, %18, %cst_14 {dimension_numbers = #tpu.dot_dimension_numbers<[1], [0], [0], [1], [0, 0, 1, 1], [], []>} : vector<256x128xbf16>, vector<128x128xbf16>, vector<256x128xf32> -> vector<256x128xf32>
    %c0_15 = arith.constant 0 : index
    %c0_16 = arith.constant 0 : index
    %20 = vector.load %arg7[%c0_15, %c0_16] : memref<1x128xf32, #tpu.memory_space<vmem>>, vector<1x128xf32>
    %21 = vector.broadcast %20 : vector<1x128xf32> to vector<256x128xf32>
    %22 = arith.addf %19, %21 : vector<256x128xf32>
    %23 = arith.truncf %22 : vector<256x128xf32> to vector<256x128xbf16>
    %c0_17 = arith.constant 0 : index
    %c0_18 = arith.constant 0 : index
    %24 = vector.load %arg8[%c0_17, %c0_18] : memref<256x128xbf16, #tpu.memory_space<vmem>>, vector<256x128xbf16>
    tpu.vector_store %arg8[%c0_17, %c0_18], %23 {strides = array<i32>} : memref<256x128xbf16, #tpu.memory_space<vmem>>, vector<256x128xbf16>,
    return
  }
  func.func @transform_0(%arg0: i32) -> (i32, i32) {
    %c0_i32 = arith.constant 0 : i32
    %c0_i32_0 = arith.constant 0 : i32
    return %arg0, %c0_i32 : i32, i32
  }
  func.func @transform_1(%arg0: i32) -> (i32, i32) {
    %c0_i32 = arith.constant 0 : i32
    %c0_i32_0 = arith.constant 0 : i32
    %c0_i32_1 = arith.constant 0 : i32
    return %c0_i32, %c0_i32_0 : i32, i32
  }
  func.func @transform_2(%arg0: i32) -> (i32, i32) {
    %c0_i32 = arith.constant 0 : i32
    %c0_i32_0 = arith.constant 0 : i32
    %c0_i32_1 = arith.constant 0 : i32
    return %c0_i32, %c0_i32_0 : i32, i32
  }
  func.func @transform_3(%arg0: i32) -> (i32, i32) {
    %c0_i32 = arith.constant 0 : i32
    %c0_i32_0 = arith.constant 0 : i32
    %c0_i32_1 = arith.constant 0 : i32
    return %c0_i32, %c0_i32_0 : i32, i32
  }
  func.func @transform_4(%arg0: i32) -> (i32, i32) {
    %c0_i32 = arith.constant 0 : i32
    %c0_i32_0 = arith.constant 0 : i32
    %c0_i32_1 = arith.constant 0 : i32
    return %c0_i32, %c0_i32_0 : i32, i32
  }
  func.func @transform_5(%arg0: i32) -> (i32, i32) {
    %c0_i32 = arith.constant 0 : i32
    %c0_i32_0 = arith.constant 0 : i32
    %c0_i32_1 = arith.constant 0 : i32
    return %c0_i32, %c0_i32_0 : i32, i32
  }
  func.func @transform_6(%arg0: i32) -> (i32, i32) {
    %c0_i32 = arith.constant 0 : i32
    %c0_i32_0 = arith.constant 0 : i32
    %c0_i32_1 = arith.constant 0 : i32
    return %c0_i32, %c0_i32_0 : i32, i32
  }
  func.func @transform_7(%arg0: i32) -> (i32, i32) {
    %c0_i32 = arith.constant 0 : i32
    %c0_i32_0 = arith.constant 0 : i32
    return %arg0, %c0_i32 : i32, i32
  }
}

</mosaic_0001>

<llo_original>
// kernel: tpu_custom_call.1
$region0: #{tpu_custom_call.1}
  #allocation0 [shape = 'u32[]', space=smem, size = 0x4, offset = 0x4, fixed_abs, tag = 'smem constant byte address 0x4 - core index']
  #allocation1 [shape = 'u32[144,128]{1,0:T(1,128)}', space=vmem, size = 0x12000, scoped, tag = 'internal scratch']
  %s0 = inlined_call_operand.vmem [shape: f32[256,32], index: 0, kind: input, shape index: {}]
  %s1 = inlined_call_operand.vmem [shape: bf16[32,128], index: 1, kind: input, shape index: {}]
  %s2 = inlined_call_operand.vmem [shape: f32[1,128], index: 2, kind: input, shape index: {}]
  %s3 = inlined_call_operand.vmem [shape: bf16[128,128], index: 3, kind: input, shape index: {}]
  %s4 = inlined_call_operand.vmem [shape: f32[1,128], index: 4, kind: input, shape index: {}]
  %s5 = inlined_call_operand.vmem [shape: bf16[128,128], index: 5, kind: input, shape index: {}]
  %s6 = inlined_call_operand.vmem [shape: f32[1,128], index: 6, kind: input, shape index: {}]
  %s7 = inlined_call_operand.hbm [shape: bf16[256,128], index: 7, kind: output, shape index: {}]
  %s8 = sld [smem:[#allocation0]]
  $region38: #{tpu_custom_call.1} parent=0
    _
  %s10 = ssub.s32 1, %s8
  %s11 = scalar_select 0, %s10, %s8
  $region1: #{tpu_custom_call.1} parent=0
    #allocation2 [shape = 'u8[65536]{0}', space=vmem, size = 0x10000, scoped, tag = 'output window, operand 0, single buffered']
    #allocation3 [shape = 's32[1]{0}', space=sflag, size = 0x4, scoped, tag = 'scoped memory for tpu_custom_call.1']
    %12 = vsyncpa [#allocation3], 0
    // Predicated region
    $region2: #{tpu_custom_call.1} parent=1 // pred_check
      _
    $region3: #{tpu_custom_call.1} parent=1 // pred_check_branch
      %14 = sbr.rel (0) target = $region5
    $region4: #{tpu_custom_call.1} parent=1 // pred_region
      _
    $region5: #{tpu_custom_call.1} parent=1 // pred_fallthru
      _
    // Predicated region
    $region6: #{tpu_custom_call.1} parent=1 // pred_check
      _
    $region7: #{tpu_custom_call.1} parent=1 // pred_check_branch
      %16 = sbr.rel (0) target = $region9
    $region8: #{tpu_custom_call.1} parent=1 // pred_region
      _
    $region9: #{tpu_custom_call.1} parent=1 // pred_fallthru
      _
    // Predicated region
    $region10: #{tpu_custom_call.1} parent=1 // pred_check
      _
    $region11: #{tpu_custom_call.1} parent=1 // pred_check_branch
      %18 = sbr.rel (0) target = $region13
    $region12: #{tpu_custom_call.1} parent=1 // pred_region
      _
    $region13: #{tpu_custom_call.1} parent=1 // pred_fallthru
      _
    // Predicated region
    $region14: #{tpu_custom_call.1} parent=1 // pred_check
      _
    $region15: #{tpu_custom_call.1} parent=1 // pred_check_branch
      %20 = sbr.rel (0) target = $region17
    $region16: #{tpu_custom_call.1} parent=1 // pred_region
      _
    $region17: #{tpu_custom_call.1} parent=1 // pred_fallthru
      _
    // Predicated region
    $region18: #{tpu_custom_call.1} parent=1 // pred_check
      _
    $region19: #{tpu_custom_call.1} parent=1 // pred_check_branch
      %22 = sbr.rel (0) target = $region21
    $region20: #{tpu_custom_call.1} parent=1 // pred_region
      _
    $region21: #{tpu_custom_call.1} parent=1 // pred_fallthru
      _
    // Predicated region
    $region22: #{tpu_custom_call.1} parent=1 // pred_check
      _
    $region23: #{tpu_custom_call.1} parent=1 // pred_check_branch
      %24 = sbr.rel (0) target = $region25
    $region24: #{tpu_custom_call.1} parent=1 // pred_region
      _
    $region25: #{tpu_custom_call.1} parent=1 // pred_fallthru
      _
    // Predicated region
    $region26: #{tpu_custom_call.1} parent=1 // pred_check
      _
    $region27: #{tpu_custom_call.1} parent=1 // pred_check_branch
      %26 = sbr.rel (0) target = $region29
    $region28: #{tpu_custom_call.1} parent=1 // pred_region
      _
    $region29: #{tpu_custom_call.1} parent=1 // pred_fallthru
      _
    %v28 = vld [vmem:[%s0] sm:$0xff]
    %v29 = vld [vmem:[%s0 + $0x8] sm:$0xff]
    %v30 = vld [vmem:[%s0 + $0x10] sm:$0xff]
    %v31 = vld [vmem:[%s0 + $0x18] sm:$0xff]
    %v32 = vld [vmem:[%s0 + $0x20] sm:$0xff]
    %v33 = vld [vmem:[%s0 + $0x28] sm:$0xff]
    %v34 = vld [vmem:[%s0 + $0x30] sm:$0xff]
    %v35 = vld [vmem:[%s0 + $0x38] sm:$0xff]
    %v36 = vld [vmem:[%s0 + $0x40] sm:$0xff]
    %v37 = vld [vmem:[%s0 + $0x48] sm:$0xff]
    %v38 = vld [vmem:[%s0 + $0x50] sm:$0xff]
    %v39 = vld [vmem:[%s0 + $0x58] sm:$0xff]
    %v40 = vld [vmem:[%s0 + $0x60] sm:$0xff]
    %v41 = vld [vmem:[%s0 + $0x68] sm:$0xff]
    %v42 = vld [vmem:[%s0 + $0x70] sm:$0xff]
    %v43 = vld [vmem:[%s0 + $0x78] sm:$0xff]
    %v44 = vld [vmem:[%s0 + $0x80] sm:$0xff]
    %v45 = vld [vmem:[%s0 + $0x88] sm:$0xff]
    %v46 = vld [vmem:[%s0 + $0x90] sm:$0xff]
    %v47 = vld [vmem:[%s0 + $0x98] sm:$0xff]
    %v48 = vld [vmem:[%s0 + $0xa0] sm:$0xff]
    %v49 = vld [vmem:[%s0 + $0xa8] sm:$0xff]
    %v50 = vld [vmem:[%s0 + $0xb0] sm:$0xff]
    %v51 = vld [vmem:[%s0 + $0xb8] sm:$0xff]
    %v52 = vld [vmem:[%s0 + $0xc0] sm:$0xff]
    %v53 = vld [vmem:[%s0 + $0xc8] sm:$0xff]
    %v54 = vld [vmem:[%s0 + $0xd0] sm:$0xff]
    %v55 = vld [vmem:[%s0 + $0xd8] sm:$0xff]
    %v56 = vld [vmem:[%s0 + $0xe0] sm:$0xff]
    %v57 = vld [vmem:[%s0 + $0xe8] sm:$0xff]
    %v58 = vld [vmem:[%s0 + $0xf0] sm:$0xff]
    %v59 = vld [vmem:[%s0 + $0xf8] sm:$0xff]
    %v60 = vpack.c.bf16 %v29, %v28
    %v61 = vpack.c.bf16 %v31, %v30
    %v62 = vpack.c.bf16 %v33, %v32
    %v63 = vpack.c.bf16 %v35, %v34
    %v64 = vpack.c.bf16 %v37, %v36
    %v65 = vpack.c.bf16 %v39, %v38
    %v66 = vpack.c.bf16 %v41, %v40
    %v67 = vpack.c.bf16 %v43, %v42
    %v68 = vpack.c.bf16 %v45, %v44
    %v69 = vpack.c.bf16 %v47, %v46
    %v70 = vpack.c.bf16 %v49, %v48
    %v71 = vpack.c.bf16 %v51, %v50
    %v72 = vpack.c.bf16 %v53, %v52
    %v73 = vpack.c.bf16 %v55, %v54
    %v74 = vpack.c.bf16 %v57, %v56
    %v75 = vpack.c.bf16 %v59, %v58
    %v76 = vld [vmem:[%s1] sm:$0xf]
    %v77 = vld [vmem:[%s1 + $0x4] sm:$0xf]
    %v78 = vld [vmem:[%s1 + $0x8] sm:$0xf]
    %v79 = vld [vmem:[%s1 + $0xc] sm:$0xf]
    %v80 = vld [vmem:[%s2] sm:$0x1]
    %v82 = vlaneseq
    %v83 = vshrl.u32 %v82, 7
    %v84 = vsub.s32 0, %v83
    %v85 = vrot.slane %v80, %v84
    %v91 = vunpack.c.l.b16 %v76
    %v92 = vunpack.c.l.b16 %v77
    %v93 = vunpack.c.l.b16 %v78
    %v94 = vunpack.c.l.b16 %v79
    %v95 = vpack.c.b16 %v92, %v91
    %v96 = vpack.c.b16 %v94, %v93
    %vm99 = vcmask 261120
    %v101 = vsel %vm99, %v60, 0
    %v104 = vsel %vm99, %v61, 0
    %v107 = vsel %vm99, %v62, 0
    %v110 = vsel %vm99, %v63, 0
    %v113 = vsel %vm99, %v64, 0
    %v116 = vsel %vm99, %v65, 0
    %v119 = vsel %vm99, %v66, 0
    %v122 = vsel %vm99, %v67, 0
    %v125 = vsel %vm99, %v68, 0
    %v128 = vsel %vm99, %v69, 0
    %v131 = vsel %vm99, %v70, 0
    %v134 = vsel %vm99, %v71, 0
    %v137 = vsel %vm99, %v72, 0
    %v140 = vsel %vm99, %v73, 0
    %v143 = vsel %vm99, %v74, 0
    %v146 = vsel %vm99, %v75, 0
    %148 = vmatprep.subr.bf16.mxu0 0
    %149 = vmatpush1.bf16.msra.mxu0 0
    %150 = vmatprep.subr.bf16.mxu0 0
    %151 = vmatpush1.bf16.msra.mxu0 0
    %152 = vmatprep.subr.bf16.mxu0 0
    %153 = vmatpush1.bf16.msra.mxu0 0
    %154 = vmatprep.subr.bf16.mxu0 0
    %155 = vmatpush1.bf16.msra.mxu0 0
    %156 = vmatprep.subr.bf16.mxu0 0
    %157 = vmatpush1.bf16.msra.mxu0 0
    %158 = vmatprep.subr.bf16.mxu0 0
    %159 = vmatpush1.bf16.msra.mxu0 0
    %160 = vmatprep.subr.bf16.mxu0 0
    %161 = vmatpush1.bf16.msra.mxu0 %v96
    %162 = vmatprep.subr.bf16.mxu0 0
    %163 = vmatpush1.bf16.msra.mxu0 %v95
    %164 = vmatprep.subr.bf16.mxu0 0
    %165 = vmatpush2.bf16.msra.mxu0 0
    %166 = vmatprep.subr.bf16.mxu0 0
    %167 = vmatpush2.bf16.msra.mxu0 0
    %168 = vmatprep.subr.bf16.mxu0 0
    %169 = vmatpush2.bf16.msra.mxu0 0
    %170 = vmatprep.subr.bf16.mxu0 0
    %171 = vmatpush2.bf16.msra.mxu0 0
    %172 = vmatprep.subr.bf16.mxu0 0
    %173 = vmatpush2.bf16.msra.mxu0 0
    %174 = vmatprep.subr.bf16.mxu0 0
    %175 = vmatpush2.bf16.msra.mxu0 0
    %176 = vmatprep.subr.bf16.mxu0 0
    %177 = vmatpush2.bf16.msra.mxu0 0
    %178 = vmatprep.subr.bf16.mxu0 0
    %179 = vmatpush2.bf16.msra.mxu0 0
    %180 = vmatprep.mubr.bf16.mxu0 0
    %181 = vmatmul.mubr.bf16.gmra.mxu0 %v101
    %v182 = vpop.f32.mrf.mxu0
    %v183 = vadd.f32 %v85, %v182
    %v184 = vpop.f32.mrf.mxu0
    %v185 = vpop.f32.mrf.mxu0
    %v186 = vadd.f32 %v85, %v185
    %v187 = vpop.f32.mrf.mxu0
    %188 = vmatprep.mubr.bf16.mxu0 0
    %189 = vmatmul.mubr.bf16.gmra.mxu0 %v104
    %v190 = vpop.f32.mrf.mxu0
    %v191 = vadd.f32 %v85, %v190
    %v192 = vpop.f32.mrf.mxu0
    %v193 = vpop.f32.mrf.mxu0
    %v194 = vadd.f32 %v85, %v193
    %v195 = vpop.f32.mrf.mxu0
    %196 = vmatprep.mubr.bf16.mxu0 0
    %197 = vmatmul.mubr.bf16.gmra.mxu0 %v107
    %v198 = vpop.f32.mrf.mxu0
    %v199 = vadd.f32 %v85, %v198
    %v200 = vpop.f32.mrf.mxu0
    %v201 = vpop.f32.mrf.mxu0
    %v202 = vadd.f32 %v85, %v201
    %v203 = vpop.f32.mrf.mxu0
    %204 = vmatprep.mubr.bf16.mxu0 0
    %205 = vmatmul.mubr.bf16.gmra.mxu0 %v110
    %v206 = vpop.f32.mrf.mxu0
    %v207 = vadd.f32 %v85, %v206
    %v208 = vpop.f32.mrf.mxu0
    %v209 = vpop.f32.mrf.mxu0
    %v210 = vadd.f32 %v85, %v209
    %v211 = vpop.f32.mrf.mxu0
    %212 = vmatprep.mubr.bf16.mxu0 0
    %213 = vmatmul.mubr.bf16.gmra.mxu0 %v113
    %v214 = vpop.f32.mrf.mxu0
    %v215 = vadd.f32 %v85, %v214
    %v216 = vpop.f32.mrf.mxu0
    %v217 = vpop.f32.mrf.mxu0
    %v218 = vadd.f32 %v85, %v217
    %v219 = vpop.f32.mrf.mxu0
    %220 = vmatprep.mubr.bf16.mxu0 0
    %221 = vmatmul.mubr.bf16.gmra.mxu0 %v116
    %v222 = vpop.f32.mrf.mxu0
    %v223 = vadd.f32 %v85, %v222
    %v224 = vpop.f32.mrf.mxu0
    %v225 = vpop.f32.mrf.mxu0
    %v226 = vadd.f32 %v85, %v225
    %v227 = vpop.f32.mrf.mxu0
    %228 = vmatprep.mubr.bf16.mxu0 0
    %229 = vmatmul.mubr.bf16.gmra.mxu0 %v119
    %v230 = vpop.f32.mrf.mxu0
    %v231 = vadd.f32 %v85, %v230
    %v232 = vpop.f32.mrf.mxu0
    %v233 = vpop.f32.mrf.mxu0
    %v234 = vadd.f32 %v85, %v233
    %v235 = vpop.f32.mrf.mxu0
    %236 = vmatprep.mubr.bf16.mxu0 0
    %237 = vmatmul.mubr.bf16.gmra.mxu0 %v122
    %v238 = vpop.f32.mrf.mxu0
    %v239 = vadd.f32 %v85, %v238
    %v240 = vpop.f32.mrf.mxu0
    %v241 = vpop.f32.mrf.mxu0
    %v242 = vadd.f32 %v85, %v241
    %v243 = vpop.f32.mrf.mxu0
    %244 = vmatprep.mubr.bf16.mxu0 0
    %245 = vmatmul.mubr.bf16.gmra.mxu0 %v125
    %v246 = vpop.f32.mrf.mxu0
    %v247 = vadd.f32 %v85, %v246
    %v248 = vpop.f32.mrf.mxu0
    %v249 = vpop.f32.mrf.mxu0
    %v250 = vadd.f32 %v85, %v249
    %v251 = vpop.f32.mrf.mxu0
    %252 = vmatprep.mubr.bf16.mxu0 0
    %253 = vmatmul.mubr.bf16.gmra.mxu0 %v128
    %v254 = vpop.f32.mrf.mxu0
    %v255 = vadd.f32 %v85, %v254
    %v256 = vpop.f32.mrf.mxu0
    %v257 = vpop.f32.mrf.mxu0
    %v258 = vadd.f32 %v85, %v257
    %v259 = vpop.f32.mrf.mxu0
    %260 = vmatprep.mubr.bf16.mxu0 0
    %261 = vmatmul.mubr.bf16.gmra.mxu0 %v131
    %v262 = vpop.f32.mrf.mxu0
    %v263 = vadd.f32 %v85, %v262
    %v264 = vpop.f32.mrf.mxu0
    %v265 = vpop.f32.mrf.mxu0
    %v266 = vadd.f32 %v85, %v265
    %v267 = vpop.f32.mrf.mxu0
    %268 = vmatprep.mubr.bf16.mxu0 0
    %269 = vmatmul.mubr.bf16.gmra.mxu0 %v134
    %v270 = vpop.f32.mrf.mxu0
    %v271 = vadd.f32 %v85, %v270
    %v272 = vpop.f32.mrf.mxu0
    %v273 = vpop.f32.mrf.mxu0
    %v274 = vadd.f32 %v85, %v273
    %v275 = vpop.f32.mrf.mxu0
    %276 = vmatprep.mubr.bf16.mxu0 0
    %277 = vmatmul.mubr.bf16.gmra.mxu0 %v137
    %v278 = vpop.f32.mrf.mxu0
    %v279 = vadd.f32 %v85, %v278
    %v280 = vpop.f32.mrf.mxu0
    %v281 = vpop.f32.mrf.mxu0
    %v282 = vadd.f32 %v85, %v281
    %v283 = vpop.f32.mrf.mxu0
    %284 = vmatprep.mubr.bf16.mxu0 0
    %285 = vmatmul.mubr.bf16.gmra.mxu0 %v140
    %v286 = vpop.f32.mrf.mxu0
    %v287 = vadd.f32 %v85, %v286
    %v288 = vpop.f32.mrf.mxu0
    %v289 = vpop.f32.mrf.mxu0
    %v290 = vadd.f32 %v85, %v289
    %v291 = vpop.f32.mrf.mxu0
    %292 = vmatprep.mubr.bf16.mxu0 0
    %293 = vmatmul.mubr.bf16.gmra.mxu0 %v143
    %v294 = vpop.f32.mrf.mxu0
    %v295 = vadd.f32 %v85, %v294
    %v296 = vpop.f32.mrf.mxu0
    %v297 = vpop.f32.mrf.mxu0
    %v298 = vadd.f32 %v85, %v297
    %v299 = vpop.f32.mrf.mxu0
    %300 = vmatprep.mubr.bf16.mxu0 0
    %301 = vmatmul.mubr.bf16.gmra.mxu0 %v146
    %v302 = vpop.f32.mrf.mxu0
    %v303 = vadd.f32 %v85, %v302
    %v304 = vpop.f32.mrf.mxu0
    %v305 = vpop.f32.mrf.mxu0
    %v306 = vadd.f32 %v85, %v305
    %v307 = vpop.f32.mrf.mxu0
    %308 = vdwg.mxu0
    %v309 = vmax.f32 %v183, 0.0
    %v310 = vmax.f32 %v186, 0.0
    %v311 = vmax.f32 %v191, 0.0
    %v312 = vmax.f32 %v194, 0.0
    %v313 = vmax.f32 %v199, 0.0
    %v314 = vmax.f32 %v202, 0.0
    %v315 = vmax.f32 %v207, 0.0
    %v316 = vmax.f32 %v210, 0.0
    %v317 = vmax.f32 %v215, 0.0
    %v318 = vmax.f32 %v218, 0.0
    %v319 = vmax.f32 %v223, 0.0
    %v320 = vmax.f32 %v226, 0.0
    %v321 = vmax.f32 %v231, 0.0
    %v322 = vmax.f32 %v234, 0.0
    %v323 = vmax.f32 %v239, 0.0
    %v324 = vmax.f32 %v242, 0.0
    %v325 = vmax.f32 %v247, 0.0
    %v326 = vmax.f32 %v250, 0.0
    %v327 = vmax.f32 %v255, 0.0
    %v328 = vmax.f32 %v258, 0.0
    %v329 = vmax.f32 %v263, 0.0
    %v330 = vmax.f32 %v266, 0.0
    %v331 = vmax.f32 %v271, 0.0
    %v332 = vmax.f32 %v274, 0.0
    %v333 = vmax.f32 %v279, 0.0
    %v334 = vmax.f32 %v282, 0.0
    %v335 = vmax.f32 %v287, 0.0
    %v336 = vmax.f32 %v290, 0.0
    %v337 = vmax.f32 %v295, 0.0
    %v338 = vmax.f32 %v298, 0.0
    %v339 = vmax.f32 %v303, 0.0
    %v340 = vmax.f32 %v306, 0.0
    %v341 = vpack.c.bf16 %v310, %v309
    %v342 = vpack.c.bf16 %v312, %v311
    %v343 = vpack.c.bf16 %v314, %v313
    %v344 = vpack.c.bf16 %v316, %v315
    %v345 = vpack.c.bf16 %v318, %v317
    %v346 = vpack.c.bf16 %v320, %v319
    %v347 = vpack.c.bf16 %v322, %v321
    %v348 = vpack.c.bf16 %v324, %v323
    %v349 = vpack.c.bf16 %v326, %v325
    %v350 = vpack.c.bf16 %v328, %v327
    %v351 = vpack.c.bf16 %v330, %v329
    %v352 = vpack.c.bf16 %v332, %v331
    %v353 = vpack.c.bf16 %v334, %v333
    %v354 = vpack.c.bf16 %v336, %v335
    %v355 = vpack.c.bf16 %v338, %v337
    %v356 = vpack.c.bf16 %v340, %v339
    %v357 = vld [vmem:[%s3] sm:$0xf]
    %v358 = vld [vmem:[%s3 + $0x4] sm:$0xf]
    %v359 = vld [vmem:[%s3 + $0x8] sm:$0xf]
    %v360 = vld [vmem:[%s3 + $0xc] sm:$0xf]
    %v361 = vld [vmem:[%s3 + $0x10] sm:$0xf]
    %v362 = vld [vmem:[%s3 + $0x14] sm:$0xf]
    %v363 = vld [vmem:[%s3 + $0x18] sm:$0xf]
    %v364 = vld [vmem:[%s3 + $0x1c] sm:$0xf]
    %v365 = vld [vmem:[%s3 + $0x20] sm:$0xf]
    %v366 = vld [vmem:[%s3 + $0x24] sm:$0xf]
    %v367 = vld [vmem:[%s3 + $0x28] sm:$0xf]
    %v368 = vld [vmem:[%s3 + $0x2c] sm:$0xf]
    %v369 = vld [vmem:[%s3 + $0x30] sm:$0xf]
    %v370 = vld [vmem:[%s3 + $0x34] sm:$0xf]
    %v371 = vld [vmem:[%s3 + $0x38] sm:$0xf]
    %v372 = vld [vmem:[%s3 + $0x3c] sm:$0xf]
    %v373 = vld [vmem:[%s4] sm:$0x1]
    %v375 = vlaneseq
    %v376 = vshrl.u32 %v375, 7
    %v377 = vsub.s32 0, %v376
    %v378 = vrot.slane %v373, %v377
    %v396 = vunpack.c.l.b16 %v357
    %v397 = vunpack.c.l.b16 %v358
    %v398 = vunpack.c.l.b16 %v359
    %v399 = vunpack.c.l.b16 %v360
    %v400 = vunpack.c.l.b16 %v361
    %v401 = vunpack.c.l.b16 %v362
    %v402 = vunpack.c.l.b16 %v363
    %v403 = vunpack.c.l.b16 %v364
    %v404 = vunpack.c.l.b16 %v365
    %v405 = vunpack.c.l.b16 %v366
    %v406 = vunpack.c.l.b16 %v367
    %v407 = vunpack.c.l.b16 %v368
    %v408 = vunpack.c.l.b16 %v369
    %v409 = vunpack.c.l.b16 %v370
    %v410 = vunpack.c.l.b16 %v371
    %v411 = vunpack.c.l.b16 %v372
    %v412 = vpack.c.b16 %v397, %v396
    %v413 = vpack.c.b16 %v399, %v398
    %v414 = vpack.c.b16 %v401, %v400
    %v415 = vpack.c.b16 %v403, %v402
    %v416 = vpack.c.b16 %v405, %v404
    %v417 = vpack.c.b16 %v407, %v406
    %v418 = vpack.c.b16 %v409, %v408
    %v419 = vpack.c.b16 %v411, %v410
    %428 = vmatprep.subr.bf16.mxu0 0
    %429 = vmatpush1.bf16.msra.mxu0 %v419
    %430 = vmatprep.subr.bf16.mxu0 0
    %431 = vmatpush1.bf16.msra.mxu0 %v418
    %432 = vmatprep.subr.bf16.mxu0 0
    %433 = vmatpush1.bf16.msra.mxu0 %v417
    %434 = vmatprep.subr.bf16.mxu0 0
    %435 = vmatpush1.bf16.msra.mxu0 %v416
    %436 = vmatprep.subr.bf16.mxu0 0
    %437 = vmatpush1.bf16.msra.mxu0 %v415
    %438 = vmatprep.subr.bf16.mxu0 0
    %439 = vmatpush1.bf16.msra.mxu0 %v414
    %440 = vmatprep.subr.bf16.mxu0 0
    %441 = vmatpush1.bf16.msra.mxu0 %v413
    %442 = vmatprep.subr.bf16.mxu0 0
    %443 = vmatpush1.bf16.msra.mxu0 %v412
    %444 = vmatprep.subr.bf16.mxu0 0
    %445 = vmatpush2.bf16.msra.mxu0 0
    %446 = vmatprep.subr.bf16.mxu0 0
    %447 = vmatpush2.bf16.msra.mxu0 0
    %448 = vmatprep.subr.bf16.mxu0 0
    %449 = vmatpush2.bf16.msra.mxu0 0
    %450 = vmatprep.subr.bf16.mxu0 0
    %451 = vmatpush2.bf16.msra.mxu0 0
    %452 = vmatprep.subr.bf16.mxu0 0
    %453 = vmatpush2.bf16.msra.mxu0 0
    %454 = vmatprep.subr.bf16.mxu0 0
    %455 = vmatpush2.bf16.msra.mxu0 0
    %456 = vmatprep.subr.bf16.mxu0 0
    %457 = vmatpush2.bf16.msra.mxu0 0
    %458 = vmatprep.subr.bf16.mxu0 0
    %459 = vmatpush2.bf16.msra.mxu0 0
    %460 = vmatprep.mubr.bf16.mxu0 0
    %461 = vmatmul.mubr.bf16.gmra.mxu0 %v341
    %v462 = vpop.f32.mrf.mxu0
    %v463 = vadd.f32 %v378, %v462
    %v464 = vpop.f32.mrf.mxu0
    %v465 = vpop.f32.mrf.mxu0
    %v466 = vadd.f32 %v378, %v465
    %v467 = vpop.f32.mrf.mxu0
    %468 = vmatprep.mubr.bf16.mxu0 0
    %469 = vmatmul.mubr.bf16.gmra.mxu0 %v342
    %v470 = vpop.f32.mrf.mxu0
    %v471 = vadd.f32 %v378, %v470
    %v472 = vpop.f32.mrf.mxu0
    %v473 = vpop.f32.mrf.mxu0
    %v474 = vadd.f32 %v378, %v473
    %v475 = vpop.f32.mrf.mxu0
    %476 = vmatprep.mubr.bf16.mxu0 0
    %477 = vmatmul.mubr.bf16.gmra.mxu0 %v343
    %v478 = vpop.f32.mrf.mxu0
    %v479 = vadd.f32 %v378, %v478
    %v480 = vpop.f32.mrf.mxu0
    %v481 = vpop.f32.mrf.mxu0
    %v482 = vadd.f32 %v378, %v481
    %v483 = vpop.f32.mrf.mxu0
    %484 = vmatprep.mubr.bf16.mxu0 0
    %485 = vmatmul.mubr.bf16.gmra.mxu0 %v344
    %v486 = vpop.f32.mrf.mxu0
    %v487 = vadd.f32 %v378, %v486
    %v488 = vpop.f32.mrf.mxu0
    %v489 = vpop.f32.mrf.mxu0
    %v490 = vadd.f32 %v378, %v489
    %v491 = vpop.f32.mrf.mxu0
    %492 = vmatprep.mubr.bf16.mxu0 0
    %493 = vmatmul.mubr.bf16.gmra.mxu0 %v345
    %v494 = vpop.f32.mrf.mxu0
    %v495 = vadd.f32 %v378, %v494
    %v496 = vpop.f32.mrf.mxu0
    %v497 = vpop.f32.mrf.mxu0
    %v498 = vadd.f32 %v378, %v497
    %v499 = vpop.f32.mrf.mxu0
    %500 = vmatprep.mubr.bf16.mxu0 0
    %501 = vmatmul.mubr.bf16.gmra.mxu0 %v346
    %v502 = vpop.f32.mrf.mxu0
    %v503 = vadd.f32 %v378, %v502
    %v504 = vpop.f32.mrf.mxu0
    %v505 = vpop.f32.mrf.mxu0
    %v506 = vadd.f32 %v378, %v505
    %v507 = vpop.f32.mrf.mxu0
    %508 = vmatprep.mubr.bf16.mxu0 0
    %509 = vmatmul.mubr.bf16.gmra.mxu0 %v347
    %v510 = vpop.f32.mrf.mxu0
    %v511 = vadd.f32 %v378, %v510
    %v512 = vpop.f32.mrf.mxu0
    %v513 = vpop.f32.mrf.mxu0
    %v514 = vadd.f32 %v378, %v513
    %v515 = vpop.f32.mrf.mxu0
    %516 = vmatprep.mubr.bf16.mxu0 0
    %517 = vmatmul.mubr.bf16.gmra.mxu0 %v348
    %v518 = vpop.f32.mrf.mxu0
    %v519 = vadd.f32 %v378, %v518
    %v520 = vpop.f32.mrf.mxu0
    %v521 = vpop.f32.mrf.mxu0
    %v522 = vadd.f32 %v378, %v521
    %v523 = vpop.f32.mrf.mxu0
    %524 = vmatprep.mubr.bf16.mxu0 0
    %525 = vmatmul.mubr.bf16.gmra.mxu0 %v349
    %v526 = vpop.f32.mrf.mxu0
    %v527 = vadd.f32 %v378, %v526
    %v528 = vpop.f32.mrf.mxu0
    %v529 = vpop.f32.mrf.mxu0
    %v530 = vadd.f32 %v378, %v529
    %v531 = vpop.f32.mrf.mxu0
    %532 = vmatprep.mubr.bf16.mxu0 0
    %533 = vmatmul.mubr.bf16.gmra.mxu0 %v350
    %v534 = vpop.f32.mrf.mxu0
    %v535 = vadd.f32 %v378, %v534
    %v536 = vpop.f32.mrf.mxu0
    %v537 = vpop.f32.mrf.mxu0
    %v538 = vadd.f32 %v378, %v537
    %v539 = vpop.f32.mrf.mxu0
    %540 = vmatprep.mubr.bf16.mxu0 0
    %541 = vmatmul.mubr.bf16.gmra.mxu0 %v351
    %v542 = vpop.f32.mrf.mxu0
    %v543 = vadd.f32 %v378, %v542
    %v544 = vpop.f32.mrf.mxu0
    %v545 = vpop.f32.mrf.mxu0
    %v546 = vadd.f32 %v378, %v545
    %v547 = vpop.f32.mrf.mxu0
    %548 = vmatprep.mubr.bf16.mxu0 0
    %549 = vmatmul.mubr.bf16.gmra.mxu0 %v352
    %v550 = vpop.f32.mrf.mxu0
    %v551 = vadd.f32 %v378, %v550
    %v552 = vpop.f32.mrf.mxu0
    %v553 = vpop.f32.mrf.mxu0
    %v554 = vadd.f32 %v378, %v553
    %v555 = vpop.f32.mrf.mxu0
    %556 = vmatprep.mubr.bf16.mxu0 0
    %557 = vmatmul.mubr.bf16.gmra.mxu0 %v353
    %v558 = vpop.f32.mrf.mxu0
    %v559 = vadd.f32 %v378, %v558
    %v560 = vpop.f32.mrf.mxu0
    %v561 = vpop.f32.mrf.mxu0
    %v562 = vadd.f32 %v378, %v561
    %v563 = vpop.f32.mrf.mxu0
    %564 = vmatprep.mubr.bf16.mxu0 0
    %565 = vmatmul.mubr.bf16.gmra.mxu0 %v354
    %v566 = vpop.f32.mrf.mxu0
    %v567 = vadd.f32 %v378, %v566
    %v568 = vpop.f32.mrf.mxu0
    %v569 = vpop.f32.mrf.mxu0
    %v570 = vadd.f32 %v378, %v569
    %v571 = vpop.f32.mrf.mxu0
    %572 = vmatprep.mubr.bf16.mxu0 0
    %573 = vmatmul.mubr.bf16.gmra.mxu0 %v355
    %v574 = vpop.f32.mrf.mxu0
    %v575 = vadd.f32 %v378, %v574
    %v576 = vpop.f32.mrf.mxu0
    %v577 = vpop.f32.mrf.mxu0
    %v578 = vadd.f32 %v378, %v577
    %v579 = vpop.f32.mrf.mxu0
    %580 = vmatprep.mubr.bf16.mxu0 0
    %581 = vmatmul.mubr.bf16.gmra.mxu0 %v356
    %v582 = vpop.f32.mrf.mxu0
    %v583 = vadd.f32 %v378, %v582
    %v584 = vpop.f32.mrf.mxu0
    %v585 = vpop.f32.mrf.mxu0
    %v586 = vadd.f32 %v378, %v585
    %v587 = vpop.f32.mrf.mxu0
    %588 = vdwg.mxu0
    %v589 = vmax.f32 %v463, 0.0
    %v590 = vmax.f32 %v466, 0.0
    %v591 = vmax.f32 %v471, 0.0
    %v592 = vmax.f32 %v474, 0.0
    %v593 = vmax.f32 %v479, 0.0
    %v594 = vmax.f32 %v482, 0.0
    %v595 = vmax.f32 %v487, 0.0
    %v596 = vmax.f32 %v490, 0.0
    %v597 = vmax.f32 %v495, 0.0
    %v598 = vmax.f32 %v498, 0.0
    %v599 = vmax.f32 %v503, 0.0
    %v600 = vmax.f32 %v506, 0.0
    %v601 = vmax.f32 %v511, 0.0
    %v602 = vmax.f32 %v514, 0.0
    %v603 = vmax.f32 %v519, 0.0
    %v604 = vmax.f32 %v522, 0.0
    %v605 = vmax.f32 %v527, 0.0
    %v606 = vmax.f32 %v530, 0.0
    %v607 = vmax.f32 %v535, 0.0
    %v608 = vmax.f32 %v538, 0.0
    %v609 = vmax.f32 %v543, 0.0
    %v610 = vmax.f32 %v546, 0.0
    %v611 = vmax.f32 %v551, 0.0
    %v612 = vmax.f32 %v554, 0.0
    %v613 = vmax.f32 %v559, 0.0
    %v614 = vmax.f32 %v562, 0.0
    %v615 = vmax.f32 %v567, 0.0
    %v616 = vmax.f32 %v570, 0.0
    %v617 = vmax.f32 %v575, 0.0
    %v618 = vmax.f32 %v578, 0.0
    %v619 = vmax.f32 %v583, 0.0
    %v620 = vmax.f32 %v586, 0.0
    %v621 = vpack.c.bf16 %v590, %v589
    %v622 = vpack.c.bf16 %v592, %v591
    %v623 = vpack.c.bf16 %v594, %v593
    %v624 = vpack.c.bf16 %v596, %v595
    %v625 = vpack.c.bf16 %v598, %v597
    %v626 = vpack.c.bf16 %v600, %v599
    %v627 = vpack.c.bf16 %v602, %v601
    %v628 = vpack.c.bf16 %v604, %v603
    %v629 = vpack.c.bf16 %v606, %v605
    %v630 = vpack.c.bf16 %v608, %v607
    %v631 = vpack.c.bf16 %v610, %v609
    %v632 = vpack.c.bf16 %v612, %v611
    %v633 = vpack.c.bf16 %v614, %v613
    %v634 = vpack.c.bf16 %v616, %v615
    %v635 = vpack.c.bf16 %v618, %v617
    %v636 = vpack.c.bf16 %v620, %v619
    %v637 = vld [vmem:[%s5] sm:$0xf]
    %v638 = vld [vmem:[%s5 + $0x4] sm:$0xf]
    %v639 = vld [vmem:[%s5 + $0x8] sm:$0xf]
    %v640 = vld [vmem:[%s5 + $0xc] sm:$0xf]
    %v641 = vld [vmem:[%s5 + $0x10] sm:$0xf]
    %v642 = vld [vmem:[%s5 + $0x14] sm:$0xf]
    %v643 = vld [vmem:[%s5 + $0x18] sm:$0xf]
    %v644 = vld [vmem:[%s5 + $0x1c] sm:$0xf]
    %v645 = vld [vmem:[%s5 + $0x20] sm:$0xf]
    %v646 = vld [vmem:[%s5 + $0x24] sm:$0xf]
    %v647 = vld [vmem:[%s5 + $0x28] sm:$0xf]
    %v648 = vld [vmem:[%s5 + $0x2c] sm:$0xf]
    %v649 = vld [vmem:[%s5 + $0x30] sm:$0xf]
    %v650 = vld [vmem:[%s5 + $0x34] sm:$0xf]
    %v651 = vld [vmem:[%s5 + $0x38] sm:$0xf]
    %v652 = vld [vmem:[%s5 + $0x3c] sm:$0xf]
    %v653 = vld [vmem:[%s6] sm:$0x1]
    %v655 = vlaneseq
    %v656 = vshrl.u32 %v655, 7
    %v657 = vsub.s32 0, %v656
    %v658 = vrot.slane %v653, %v657
    %v676 = vunpack.c.l.b16 %v637
    %v677 = vunpack.c.l.b16 %v638
    %v678 = vunpack.c.l.b16 %v639
    %v679 = vunpack.c.l.b16 %v640
    %v680 = vunpack.c.l.b16 %v641
    %v681 = vunpack.c.l.b16 %v642
    %v682 = vunpack.c.l.b16 %v643
    %v683 = vunpack.c.l.b16 %v644
    %v684 = vunpack.c.l.b16 %v645
    %v685 = vunpack.c.l.b16 %v646
    %v686 = vunpack.c.l.b16 %v647
    %v687 = vunpack.c.l.b16 %v648
    %v688 = vunpack.c.l.b16 %v649
    %v689 = vunpack.c.l.b16 %v650
    %v690 = vunpack.c.l.b16 %v651
    %v691 = vunpack.c.l.b16 %v652
    %v692 = vpack.c.b16 %v677, %v676
    %v693 = vpack.c.b16 %v679, %v678
    %v694 = vpack.c.b16 %v681, %v680
    %v695 = vpack.c.b16 %v683, %v682
    %v696 = vpack.c.b16 %v685, %v684
    %v697 = vpack.c.b16 %v687, %v686
    %v698 = vpack.c.b16 %v689, %v688
    %v699 = vpack.c.b16 %v691, %v690
    %708 = vmatprep.subr.bf16.mxu0 0
    %709 = vmatpush1.bf16.msra.mxu0 %v699
    %710 = vmatprep.subr.bf16.mxu0 0
    %711 = vmatpush1.bf16.msra.mxu0 %v698
    %712 = vmatprep.subr.bf16.mxu0 0
    %713 = vmatpush1.bf16.msra.mxu0 %v697
    %714 = vmatprep.subr.bf16.mxu0 0
    %715 = vmatpush1.bf16.msra.mxu0 %v696
    %716 = vmatprep.subr.bf16.mxu0 0
    %717 = vmatpush1.bf16.msra.mxu0 %v695
    %718 = vmatprep.subr.bf16.mxu0 0
    %719 = vmatpush1.bf16.msra.mxu0 %v694
    %720 = vmatprep.subr.bf16.mxu0 0
    %721 = vmatpush1.bf16.msra.mxu0 %v693
    %722 = vmatprep.subr.bf16.mxu0 0
    %723 = vmatpush1.bf16.msra.mxu0 %v692
    %724 = vmatprep.subr.bf16.mxu0 0
    %725 = vmatpush2.bf16.msra.mxu0 0
    %726 = vmatprep.subr.bf16.mxu0 0
    %727 = vmatpush2.bf16.msra.mxu0 0
    %728 = vmatprep.subr.bf16.mxu0 0
    %729 = vmatpush2.bf16.msra.mxu0 0
    %730 = vmatprep.subr.bf16.mxu0 0
    %731 = vmatpush2.bf16.msra.mxu0 0
    %732 = vmatprep.subr.bf16.mxu0 0
    %733 = vmatpush2.bf16.msra.mxu0 0
    %734 = vmatprep.subr.bf16.mxu0 0
    %735 = vmatpush2.bf16.msra.mxu0 0
    %736 = vmatprep.subr.bf16.mxu0 0
    %737 = vmatpush2.bf16.msra.mxu0 0
    %738 = vmatprep.subr.bf16.mxu0 0
    %739 = vmatpush2.bf16.msra.mxu0 0
    %740 = vmatprep.mubr.bf16.mxu0 0
    %741 = vmatmul.mubr.bf16.gmra.mxu0 %v621
    %v742 = vpop.f32.mrf.mxu0
    %v743 = vadd.f32 %v658, %v742
    %v744 = vpop.f32.mrf.mxu0
    %v745 = vpop.f32.mrf.mxu0
    %v746 = vadd.f32 %v658, %v745
    %v747 = vpop.f32.mrf.mxu0
    %748 = vmatprep.mubr.bf16.mxu0 0
    %749 = vmatmul.mubr.bf16.gmra.mxu0 %v622
    %v750 = vpop.f32.mrf.mxu0
    %v751 = vadd.f32 %v658, %v750
    %v752 = vpop.f32.mrf.mxu0
    %v753 = vpop.f32.mrf.mxu0
    %v754 = vadd.f32 %v658, %v753
    %v755 = vpop.f32.mrf.mxu0
    %756 = vmatprep.mubr.bf16.mxu0 0
    %757 = vmatmul.mubr.bf16.gmra.mxu0 %v623
    %v758 = vpop.f32.mrf.mxu0
    %v759 = vadd.f32 %v658, %v758
    %v760 = vpop.f32.mrf.mxu0
    %v761 = vpop.f32.mrf.mxu0
    %v762 = vadd.f32 %v658, %v761
    %v763 = vpop.f32.mrf.mxu0
    %764 = vmatprep.mubr.bf16.mxu0 0
    %765 = vmatmul.mubr.bf16.gmra.mxu0 %v624
    %v766 = vpop.f32.mrf.mxu0
    %v767 = vadd.f32 %v658, %v766
    %v768 = vpop.f32.mrf.mxu0
    %v769 = vpop.f32.mrf.mxu0
    %v770 = vadd.f32 %v658, %v769
    %v771 = vpop.f32.mrf.mxu0
    %772 = vmatprep.mubr.bf16.mxu0 0
    %773 = vmatmul.mubr.bf16.gmra.mxu0 %v625
    %v774 = vpop.f32.mrf.mxu0
    %v775 = vadd.f32 %v658, %v774
    %v776 = vpop.f32.mrf.mxu0
    %v777 = vpop.f32.mrf.mxu0
    %v778 = vadd.f32 %v658, %v777
    %v779 = vpop.f32.mrf.mxu0
    %780 = vmatprep.mubr.bf16.mxu0 0
    %781 = vmatmul.mubr.bf16.gmra.mxu0 %v626
    %v782 = vpop.f32.mrf.mxu0
    %v783 = vadd.f32 %v658, %v782
    %v784 = vpop.f32.mrf.mxu0
    %v785 = vpop.f32.mrf.mxu0
    %v786 = vadd.f32 %v658, %v785
    %v787 = vpop.f32.mrf.mxu0
    %788 = vmatprep.mubr.bf16.mxu0 0
    %789 = vmatmul.mubr.bf16.gmra.mxu0 %v627
    %v790 = vpop.f32.mrf.mxu0
    %v791 = vadd.f32 %v658, %v790
    %v792 = vpop.f32.mrf.mxu0
    %v793 = vpop.f32.mrf.mxu0
    %v794 = vadd.f32 %v658, %v793
    %v795 = vpop.f32.mrf.mxu0
    %796 = vmatprep.mubr.bf16.mxu0 0
    %797 = vmatmul.mubr.bf16.gmra.mxu0 %v628
    %v798 = vpop.f32.mrf.mxu0
    %v799 = vadd.f32 %v658, %v798
    %v800 = vpop.f32.mrf.mxu0
    %v801 = vpop.f32.mrf.mxu0
    %v802 = vadd.f32 %v658, %v801
    %v803 = vpop.f32.mrf.mxu0
    %804 = vmatprep.mubr.bf16.mxu0 0
    %805 = vmatmul.mubr.bf16.gmra.mxu0 %v629
    %v806 = vpop.f32.mrf.mxu0
    %v807 = vadd.f32 %v658, %v806
    %v808 = vpop.f32.mrf.mxu0
    %v809 = vpop.f32.mrf.mxu0
    %v810 = vadd.f32 %v658, %v809
    %v811 = vpop.f32.mrf.mxu0
    %812 = vmatprep.mubr.bf16.mxu0 0
    %813 = vmatmul.mubr.bf16.gmra.mxu0 %v630
    %v814 = vpop.f32.mrf.mxu0
    %v815 = vadd.f32 %v658, %v814
    %v816 = vpop.f32.mrf.mxu0
    %v817 = vpop.f32.mrf.mxu0
    %v818 = vadd.f32 %v658, %v817
    %v819 = vpop.f32.mrf.mxu0
    %820 = vmatprep.mubr.bf16.mxu0 0
    %821 = vmatmul.mubr.bf16.gmra.mxu0 %v631
    %v822 = vpop.f32.mrf.mxu0
    %v823 = vadd.f32 %v658, %v822
    %v824 = vpop.f32.mrf.mxu0
    %v825 = vpop.f32.mrf.mxu0
    %v826 = vadd.f32 %v658, %v825
    %v827 = vpop.f32.mrf.mxu0
    %828 = vmatprep.mubr.bf16.mxu0 0
    %829 = vmatmul.mubr.bf16.gmra.mxu0 %v632
    %v830 = vpop.f32.mrf.mxu0
    %v831 = vadd.f32 %v658, %v830
    %v832 = vpop.f32.mrf.mxu0
    %v833 = vpop.f32.mrf.mxu0
    %v834 = vadd.f32 %v658, %v833
    %v835 = vpop.f32.mrf.mxu0
    %836 = vmatprep.mubr.bf16.mxu0 0
    %837 = vmatmul.mubr.bf16.gmra.mxu0 %v633
    %v838 = vpop.f32.mrf.mxu0
    %v839 = vadd.f32 %v658, %v838
    %v840 = vpop.f32.mrf.mxu0
    %v841 = vpop.f32.mrf.mxu0
    %v842 = vadd.f32 %v658, %v841
    %v843 = vpop.f32.mrf.mxu0
    %844 = vmatprep.mubr.bf16.mxu0 0
    %845 = vmatmul.mubr.bf16.gmra.mxu0 %v634
    %v846 = vpop.f32.mrf.mxu0
    %v847 = vadd.f32 %v658, %v846
    %v848 = vpop.f32.mrf.mxu0
    %v849 = vpop.f32.mrf.mxu0
    %v850 = vadd.f32 %v658, %v849
    %v851 = vpop.f32.mrf.mxu0
    %852 = vmatprep.mubr.bf16.mxu0 0
    %853 = vmatmul.mubr.bf16.gmra.mxu0 %v635
    %v854 = vpop.f32.mrf.mxu0
    %v855 = vadd.f32 %v658, %v854
    %v856 = vpop.f32.mrf.mxu0
    %v857 = vpop.f32.mrf.mxu0
    %v858 = vadd.f32 %v658, %v857
    %v859 = vpop.f32.mrf.mxu0
    %860 = vmatprep.mubr.bf16.mxu0 0
    %861 = vmatmul.mubr.bf16.gmra.mxu0 %v636
    %v862 = vpop.f32.mrf.mxu0
    %v863 = vadd.f32 %v658, %v862
    %v864 = vpop.f32.mrf.mxu0
    %v865 = vpop.f32.mrf.mxu0
    %v866 = vadd.f32 %v658, %v865
    %v867 = vpop.f32.mrf.mxu0
    %868 = vdwg.mxu0
    %v869 = vpack.c.bf16 %v746, %v743
    %v870 = vpack.c.bf16 %v754, %v751
    %v871 = vpack.c.bf16 %v762, %v759
    %v872 = vpack.c.bf16 %v770, %v767
    %v873 = vpack.c.bf16 %v778, %v775
    %v874 = vpack.c.bf16 %v786, %v783
    %v875 = vpack.c.bf16 %v794, %v791
    %v876 = vpack.c.bf16 %v802, %v799
    %v877 = vpack.c.bf16 %v810, %v807
    %v878 = vpack.c.bf16 %v818, %v815
    %v879 = vpack.c.bf16 %v826, %v823
    %v880 = vpack.c.bf16 %v834, %v831
    %v881 = vpack.c.bf16 %v842, %v839
    %v882 = vpack.c.bf16 %v850, %v847
    %v883 = vpack.c.bf16 %v858, %v855
    %v884 = vpack.c.bf16 %v866, %v863
    %v901 = vunpack.c.l.b16 %v869
    %v902 = vunpack.c.h.b16 %v869
    %v903 = vunpack.c.l.b16 %v870
    %v904 = vunpack.c.h.b16 %v870
    %v905 = vunpack.c.l.b16 %v871
    %v906 = vunpack.c.h.b16 %v871
    %v907 = vunpack.c.l.b16 %v872
    %v908 = vunpack.c.h.b16 %v872
    %v909 = vunpack.c.l.b16 %v873
    %v910 = vunpack.c.h.b16 %v873
    %v911 = vunpack.c.l.b16 %v874
    %v912 = vunpack.c.h.b16 %v874
    %v913 = vunpack.c.l.b16 %v875
    %v914 = vunpack.c.h.b16 %v875
    %v915 = vunpack.c.l.b16 %v876
    %v916 = vunpack.c.h.b16 %v876
    %v917 = vunpack.c.l.b16 %v877
    %v918 = vunpack.c.h.b16 %v877
    %v919 = vunpack.c.l.b16 %v878
    %v920 = vunpack.c.h.b16 %v878
    %v921 = vunpack.c.l.b16 %v879
    %v922 = vunpack.c.h.b16 %v879
    %v923 = vunpack.c.l.b16 %v880
    %v924 = vunpack.c.h.b16 %v880
    %v925 = vunpack.c.l.b16 %v881
    %v926 = vunpack.c.h.b16 %v881
    %v927 = vunpack.c.l.b16 %v882
    %v928 = vunpack.c.h.b16 %v882
    %v929 = vunpack.c.l.b16 %v883
    %v930 = vunpack.c.h.b16 %v883
    %v931 = vunpack.c.l.b16 %v884
    %v932 = vunpack.c.h.b16 %v884
    %v933 = vpack.c.b16 %v901, %v901
    %v934 = vpack.c.b16 %v902, %v902
    %v935 = vpack.c.b16 %v903, %v903
    %v936 = vpack.c.b16 %v904, %v904
    %v937 = vpack.c.b16 %v905, %v905
    %v938 = vpack.c.b16 %v906, %v906
    %v939 = vpack.c.b16 %v907, %v907
    %v940 = vpack.c.b16 %v908, %v908
    %v941 = vpack.c.b16 %v909, %v909
    %v942 = vpack.c.b16 %v910, %v910
    %v943 = vpack.c.b16 %v911, %v911
    %v944 = vpack.c.b16 %v912, %v912
    %v945 = vpack.c.b16 %v913, %v913
    %v946 = vpack.c.b16 %v914, %v914
    %v947 = vpack.c.b16 %v915, %v915
    %v948 = vpack.c.b16 %v916, %v916
    %v949 = vpack.c.b16 %v917, %v917
    %v950 = vpack.c.b16 %v918, %v918
    %v951 = vpack.c.b16 %v919, %v919
    %v952 = vpack.c.b16 %v920, %v920
    %v953 = vpack.c.b16 %v921, %v921
    %v954 = vpack.c.b16 %v922, %v922
    %v955 = vpack.c.b16 %v923, %v923
    %v956 = vpack.c.b16 %v924, %v924
    %v957 = vpack.c.b16 %v925, %v925
    %v958 = vpack.c.b16 %v926, %v926
    %v959 = vpack.c.b16 %v927, %v927
    %v960 = vpack.c.b16 %v928, %v928
    %v961 = vpack.c.b16 %v929, %v929
    %v962 = vpack.c.b16 %v930, %v930
    %v963 = vpack.c.b16 %v931, %v931
    %v964 = vpack.c.b16 %v932, %v932
    %997 = vst [vmem:[#allocation2] sm:$0xf] %v933
    %998 = vst [vmem:[#allocation2 + $0x4] sm:$0xf] %v934
    %999 = vst [vmem:[#allocation2 + $0x8] sm:$0xf] %v935
    %1000 = vst [vmem:[#allocation2 + $0xc] sm:$0xf] %v936
    %1001 = vst [vmem:[#allocation2 + $0x10] sm:$0xf] %v937
    %1002 = vst [vmem:[#allocation2 + $0x14] sm:$0xf] %v938
    %1003 = vst [vmem:[#allocation2 + $0x18] sm:$0xf] %v939
    %1004 = vst [vmem:[#allocation2 + $0x1c] sm:$0xf] %v940
    %1005 = vst [vmem:[#allocation2 + $0x20] sm:$0xf] %v941
    %1006 = vst [vmem:[#allocation2 + $0x24] sm:$0xf] %v942
    %1007 = vst [vmem:[#allocation2 + $0x28] sm:$0xf] %v943
    %1008 = vst [vmem:[#allocation2 + $0x2c] sm:$0xf] %v944
    %1009 = vst [vmem:[#allocation2 + $0x30] sm:$0xf] %v945
    %1010 = vst [vmem:[#allocation2 + $0x34] sm:$0xf] %v946
    %1011 = vst [vmem:[#allocation2 + $0x38] sm:$0xf] %v947
    %1012 = vst [vmem:[#allocation2 + $0x3c] sm:$0xf] %v948
    %1013 = vst [vmem:[#allocation2 + $0x40] sm:$0xf] %v949
    %1014 = vst [vmem:[#allocation2 + $0x44] sm:$0xf] %v950
    %1015 = vst [vmem:[#allocation2 + $0x48] sm:$0xf] %v951
    %1016 = vst [vmem:[#allocation2 + $0x4c] sm:$0xf] %v952
    %1017 = vst [vmem:[#allocation2 + $0x50] sm:$0xf] %v953
    %1018 = vst [vmem:[#allocation2 + $0x54] sm:$0xf] %v954
    %1019 = vst [vmem:[#allocation2 + $0x58] sm:$0xf] %v955
    %1020 = vst [vmem:[#allocation2 + $0x5c] sm:$0xf] %v956
    %1021 = vst [vmem:[#allocation2 + $0x60] sm:$0xf] %v957
    %1022 = vst [vmem:[#allocation2 + $0x64] sm:$0xf] %v958
    %1023 = vst [vmem:[#allocation2 + $0x68] sm:$0xf] %v959
    %1024 = vst [vmem:[#allocation2 + $0x6c] sm:$0xf] %v960
    %1025 = vst [vmem:[#allocation2 + $0x70] sm:$0xf] %v961
    %1026 = vst [vmem:[#allocation2 + $0x74] sm:$0xf] %v962
    %1027 = vst [vmem:[#allocation2 + $0x78] sm:$0xf] %v963
    %1028 = vst [vmem:[#allocation2 + $0x7c] sm:$0xf] %v964
    // Predicated region
    $region30: #{tpu_custom_call.1} parent=1 // pred_check
      _
    $region31: #{tpu_custom_call.1} parent=1 // pred_check_branch
      %1030 = sbr.rel (0) target = $region33
    $region32: #{tpu_custom_call.1} parent=1 // pred_region
      %s1032 = ssub.s32 2048, 2048
      %1033 = vsyncadd [#allocation3], %s1032
      %s1034 = sshll.u32 [#allocation2], 4
      %s1035 = int_to_ptr.vmem [resolvable:$true] %s1034
      %1040 = dma.vmem_to_hbm [thread:$0]  %s1035, 2048, %s7, [#allocation3], 64, 64, 4
    $region33: #{tpu_custom_call.1} parent=1 // pred_fallthru
      _
    // Predicated region
    $region34: #{tpu_custom_call.1} parent=1 // pred_check
      _
    $region35: #{tpu_custom_call.1} parent=1 // pred_check_branch
      %1042 = sbr.rel (0) target = $region37
    $region36: #{tpu_custom_call.1} parent=1 // pred_region
      %1043 = dma.done [#allocation3], 2048
    $region37: #{tpu_custom_call.1} parent=1 // pred_fallthru
      _
    %1044 = vsyncpa [#allocation3], 1

</llo_original>
